<compile_context>
chip_gen: v6e
topology: v6e:2x2x1
jax: 0.10.0
libtpu: 0.0.40
codegen_flags: <defaults>
</compile_context>

<pallas_src>
import functools

import jax
import jax.numpy as jnp
from jax import lax
from jax.experimental import pallas as pl
from jax.experimental.pallas import tpu as pltpu


def _chip_defaults():
    """(n_cores, vmem_limit_mb) derived from the local TPU generation."""
    try:
        kind = jax.devices()[0].device_kind.lower()
    except Exception:
        kind = ""
    if "v7" in kind:
        # 2 TensorCores per chip, but only 64 MiB VMEM per TC -> leave headroom.
        return 2, 48
    if "v4" in kind or "v5p" in kind or "v5 p" in kind:
        # Megacore (2 TCs), 128 MiB physical VMEM.
        return 2, 96
    # v5e / v6e (and unknown): single TensorCore, 128 MiB physical VMEM.
    return 1, 96


def _ce_kernel(scores_ref, targets_ref, sum_ref, cnt_ref, sum_sc, cnt_sc, *,
               n_rows, row_tile):
    """Masked cross-entropy over one tile of rows, accumulated per core.

    scores_ref : (TM, V)      logits in native dtype (bf16 stays packed)
    targets_ref: (TM, 1)      i32 target ids, -1 marks masked / padded rows
    sum_ref    : (1, 1, 128)  f32 per-core NLL sum (written at last j only)
    cnt_ref    : (1, 1, 128)  f32 per-core valid-row count
    sum_sc     : (TM, 1)      f32 VMEM scratch accumulator (no per-step reduce)
    cnt_sc     : (TM, 1)      f32 VMEM scratch accumulator
    """
    c = pl.program_id(0)        # core-split axis ("parallel")
    j = pl.program_id(1)        # row-block reduction axis ("arbitrary")
    nj = pl.num_programs(1)

    @pl.when(j == 0)
    def _():
        sum_sc[...] = jnp.zeros_like(sum_sc)
        cnt_sc[...] = jnp.zeros_like(cnt_sc)

    s = scores_ref[...]                                          # (TM, V) native
    tgt = targets_ref[...]                                       # (TM, 1) i32

    # Global row id of each sublane from the UNclamped block index, so tail /
    # duplicated (clamped) blocks mask themselves out (row >= N).
    block_idx = c * nj + j
    row = block_idx * row_tile + lax.broadcasted_iota(jnp.int32, tgt.shape, 0)
    valid = (row < n_rows) & (tgt >= 0)                          # (TM, 1) bool

    # Row max on the packed native tile (exact: the max IS one of the values).
    m = jnp.max(s, axis=-1, keepdims=True).astype(jnp.float32)   # (TM, 1)

    # Target-logit extraction: compare/select on the packed native tile, cast
    # only the (TM, 1) result (exactly one non-zero per row -> sum is exact).
    col = lax.broadcasted_iota(jnp.int32, s.shape, 1)            # (TM, V) i32
    tgt_logit = jnp.sum(jnp.where(col == tgt, s, jnp.zeros((), s.dtype)),
                        axis=-1, keepdims=True).astype(jnp.float32)  # (TM, 1)

    # exp/log pass in f32 — the only f32 (TM, V) intermediate in the kernel.
    p = jnp.exp(s.astype(jnp.float32) - m)                       # (TM, V)
    lse_shift = jnp.log(jnp.sum(p, axis=-1, keepdims=True))      # (TM, 1) = lse - m

    # Mask with where (not multiply): stale tail rows may hold inf/NaN garbage.
    nll = jnp.where(valid, lse_shift + m - tgt_logit, 0.0)       # (TM, 1)

    sum_sc[...] += nll
    cnt_sc[...] += valid.astype(jnp.float32)

    @pl.when(j == nj - 1)
    def _():
        sum_ref[...] = jnp.broadcast_to(jnp.sum(sum_sc[...]), sum_ref.shape)
        cnt_ref[...] = jnp.broadcast_to(jnp.sum(cnt_sc[...]), cnt_ref.shape)


@functools.partial(jax.jit,
                   static_argnames=("row_tile", "vmem_limit_mb", "n_cores"))
def caption_cross_entropy_loss(scores, targets, caption_len=None, *,
                               row_tile=None, vmem_limit_mb=None, n_cores=None):
    """Pallas implementation of CaptionCrossEntropyLoss.forward.

    scores      : [B, T, V]  logits, any float dtype (streamed natively)
    targets     : [B, T]     int token ids
    caption_len : optional [B] int (matches sample_list.caption_len)
    Returns scalar f32 loss.
    """
    B, T, V = scores.shape
    N = B * T

    chip_cores, chip_vmem_mb = _chip_defaults()
    if n_cores is None:
        n_cores = chip_cores
    if vmem_limit_mb is None:
        vmem_limit_mb = chip_vmem_mb

    if caption_len is not None:
        # caption_lengths, _ = caption_len.sort(dim=0, descending=True)
        # decode_lengths = caption_lengths - 1   (pythia quirk kept as-is)
        decode_lengths = jnp.sort(caption_len)[::-1] - 1
    else:
        decode_lengths = jnp.full((B,), T, dtype=jnp.int32)

    t_idx = jnp.arange(T, dtype=jnp.int32)[None, :]              # [1, T]
    valid = t_idx < decode_lengths[:, None]                      # [B, T] (tiny)

    # Fold validity into the target ids (-1 never matches a vocab column) so
    # the kernel needs only two DMA streams.  The [N, V] logits are only
    # reshaped (free view on a contiguous [B, T, V] array), never copied.
    targets_2d = jnp.where(valid, targets.astype(jnp.int32), -1).reshape(N, 1)
    scores_2d = scores.reshape(N, V)                             # native dtype

    itemsize = jnp.dtype(scores.dtype).itemsize

    # --- tiling -----------------------------------------------------------
    # Per tile-row VMEM: double-buffered native input (2*V*itemsize) plus the
    # in-kernel f32 working set (exp intermediate + iota/compare masks) ~12*V.
    # Cap by a bytes-based DMA target rather than a fixed row count.
    if row_tile is None:
        per_row_bytes = 2 * V * itemsize + 12 * V + 16
        budget = (int(vmem_limit_mb) << 20) * 3 // 4   # headroom for Mosaic scratch
        rows_by_vmem = budget // per_row_bytes
        rows_by_dma = (8 << 20) // max(V * itemsize, 1)   # ~8 MiB native block
        row_tile = max(16, min(rows_by_vmem, max(rows_by_dma, 256), 2048))
    row_tile = min(int(row_tile), ((N + 15) // 16) * 16)
    row_tile = max(16, (row_tile // 16) * 16)                    # 16-sublane multiple

    blocks_total = pl.cdiv(N, row_tile)
    blocks_per_core = pl.cdiv(blocks_total, n_cores)

    def row_block_map(c, j):
        idx = c * blocks_per_core + j
        # Clamp so the DMA never starts past the array; the kernel masks any
        # duplicated block via its UNclamped global row index.
        return (jnp.minimum(idx, blocks_total - 1), 0)

    def out_map(c, j):
        return (c, 0, 0)

    kernel = functools.partial(_ce_kernel, n_rows=N, row_tile=row_tile)

    cost = pl.CostEstimate(
        flops=int(5 * N * V),
        transcendentals=int(N * V),
        bytes_accessed=int(N * V * itemsize + 4 * N + n_cores * 1024))

    sums, cnts = pl.pallas_call(
        kernel,
        out_shape=(jax.ShapeDtypeStruct((n_cores, 1, 128), jnp.float32),
                   jax.ShapeDtypeStruct((n_cores, 1, 128), jnp.float32)),
        grid_spec=pltpu.PrefetchScalarGridSpec(
            num_scalar_prefetch=0,
            grid=(n_cores, blocks_per_core),
            in_specs=[
                pl.BlockSpec((row_tile, V), row_block_map),
                pl.BlockSpec((row_tile, 1), row_block_map),
            ],
            out_specs=[
                pl.BlockSpec((1, 1, 128), out_map),
                pl.BlockSpec((1, 1, 128), out_map),
            ],
            scratch_shapes=[pltpu.VMEM((row_tile, 1), jnp.float32),
                            pltpu.VMEM((row_tile, 1), jnp.float32)],
        ),
        compiler_params=pltpu.CompilerParams(
            dimension_semantics=("parallel", "arbitrary"),
            vmem_limit_bytes=int(vmem_limit_mb) << 20),
        cost_estimate=cost,
    )(scores_2d, targets_2d)

    total_sum = jnp.sum(sums[:, 0, 0])
    total_cnt = jnp.sum(cnts[:, 0, 0])
    # Clamp avoids 0/0 -> NaN when no rows are valid (returns 0.0; documented
    # divergence from PyTorch, which would NaN on an empty pack).
    return total_sum / jnp.maximum(total_cnt, 1.0)


def _reference_loss(scores, targets, caption_len=None):
    """Pure-JAX reference (mirrors F.cross_entropy on packed sequences)."""
    B, T, V = scores.shape
    if caption_len is not None:
        decode_lengths = jnp.sort(caption_len)[::-1] - 1
    else:
        decode_lengths = jnp.full((B,), T, dtype=jnp.int32)
    valid = (jnp.arange(T)[None, :] < decode_lengths[:, None]).astype(jnp.float32)
    logp = jax.nn.log_softmax(scores.astype(jnp.float32), axis=-1)
    nll = -jnp.take_along_axis(logp, targets[..., None], axis=-1)[..., 0]
    return jnp.sum(nll * valid) / jnp.sum(valid)


if __name__ == "__main__":
    key = jax.random.PRNGKey(0)
    k1, k2, k3, k4 = jax.random.split(key, 4)

    # Case 1: f32 logits; both with and without caption_len.
    B, T, V = 2, 8, 32
    scores = jax.random.normal(k1, (B, T, V), dtype=jnp.float32)
    targets = jax.random.randint(k2, (B, T), 0, V, dtype=jnp.int32)
    caption_len = jnp.array([8, 6], dtype=jnp.int32)

    loss1 = caption_cross_entropy_loss(scores, targets)
    jax.block_until_ready(loss1)
    ref1 = _reference_loss(scores, targets)

    loss2 = caption_cross_entropy_loss(scores, targets, caption_len)
    jax.block_until_ready(loss2)
    ref2 = _reference_loss(scores, targets, caption_len)

    assert jnp.allclose(loss1, ref1, atol=1e-5), (loss1, ref1)
    assert jnp.allclose(loss2, ref2, atol=1e-5), (loss2, ref2)

    # Case 2: bf16 logits streamed natively; N = 30 is NOT a multiple of the
    # row tile, exercising in-kernel tail masking and multi-block reduction.
    B2, T2, V2 = 3, 10, 160
    scores_bf = jax.random.normal(k3, (B2, T2, V2), dtype=jnp.float32).astype(jnp.bfloat16)
    targets2 = jax.random.randint(k4, (B2, T2), 0, V2, dtype=jnp.int32)
    cap2 = jnp.array([10, 7, 9], dtype=jnp.int32)

    loss3 = caption_cross_entropy_loss(scores_bf, targets2, cap2, row_tile=16)
    jax.block_until_ready(loss3)
    ref3 = _reference_loss(scores_bf, targets2, cap2)
    assert jnp.allclose(loss3, ref3, atol=1e-4), (loss3, ref3)

    # Case 3: same bf16 inputs with fully-default (chip-derived) tiling.
    loss4 = caption_cross_entropy_loss(scores_bf, targets2, cap2)
    jax.block_until_ready(loss4)
    assert jnp.allclose(loss4, ref3, atol=1e-4), (loss4, ref3)

    # TODO(synk): the Losses/PythiaLoss registry dispatch and dataset-key dict
    # wrapping are host-side Python plumbing with no device compute to port.
    print("KERNEL_OK")
</pallas_src>

<mosaic_0001>
module attributes {stable_mosaic.version = 11 : i64} {
  func.func @_ce_kernel(%arg0: i32, %arg1: i32, %arg2: memref<16x32xf32, #tpu.memory_space<vmem>>, %arg3: memref<16x1xi32, #tpu.memory_space<vmem>>, %arg4: memref<1x1x128xf32, #tpu.memory_space<vmem>>, %arg5: memref<1x1x128xf32, #tpu.memory_space<vmem>>, %arg6: memref<16x1xf32, #tpu.memory_space<vmem>>, %arg7: memref<16x1xf32, #tpu.memory_space<vmem>>) attributes {dimension_semantics = [#tpu.dimension_semantics<parallel>, #tpu.dimension_semantics<arbitrary>], iteration_bounds = array<i64: 1, 1>, scalar_prefetch = 0 : i64, scratch_operands = 2 : i64, tpu.core_type = #tpu.core_type<tc>, window_params = [{transform_indices = @transform_0, window_bounds = array<i64: 16, 32>}, {transform_indices = @transform_1, window_bounds = array<i64: 16, 1>}, {transform_indices = @transform_2, window_bounds = array<i64: 1, 1, 128>}, {transform_indices = @transform_3, window_bounds = array<i64: 1, 1, 128>}]} {
    %c0_i32 = arith.constant 0 : i32
    %0 = arith.cmpi eq, %arg1, %c0_i32 : i32
    %1 = arith.extui %0 : i1 to i32
    %c0_i32_0 = arith.constant 0 : i32
    %2 = arith.cmpi ne, %1, %c0_i32_0 : i32
    scf.if %2 {
      %cst_20 = arith.constant 0.000000e+00 : f32
      %46 = vector.broadcast %cst_20 : f32 to vector<16x1xf32>
      %c0_21 = arith.constant 0 : index
      %c0_22 = arith.constant 0 : index
      %47 = vector.load %arg6[%c0_21, %c0_22] : memref<16x1xf32, #tpu.memory_space<vmem>>, vector<16x1xf32>
      tpu.vector_store %arg6[%c0_21, %c0_22], %46 {strides = array<i32>} : memref<16x1xf32, #tpu.memory_space<vmem>>, vector<16x1xf32>,
      %cst_23 = arith.constant 0.000000e+00 : f32
      %48 = vector.broadcast %cst_23 : f32 to vector<16x1xf32>
      %c0_24 = arith.constant 0 : index
      %c0_25 = arith.constant 0 : index
      %49 = vector.load %arg7[%c0_24, %c0_25] : memref<16x1xf32, #tpu.memory_space<vmem>>, vector<16x1xf32>
      tpu.vector_store %arg7[%c0_24, %c0_25], %48 {strides = array<i32>} : memref<16x1xf32, #tpu.memory_space<vmem>>, vector<16x1xf32>,
    } else {
    }
    %c0 = arith.constant 0 : index
    %c0_1 = arith.constant 0 : index
    %3 = vector.load %arg2[%c0, %c0_1] : memref<16x32xf32, #tpu.memory_space<vmem>>, vector<16x32xf32>
    %c0_2 = arith.constant 0 : index
    %c0_3 = arith.constant 0 : index
    %4 = vector.load %arg3[%c0_2, %c0_3] : memref<16x1xi32, #tpu.memory_space<vmem>>, vector<16x1xi32>
    %c1_i32 = arith.constant 1 : i32
    %5 = arith.muli %arg0, %c1_i32 : i32
    %6 = arith.addi %5, %arg1 : i32
    %c16_i32 = arith.constant 16 : i32
    %7 = arith.muli %6, %c16_i32 : i32
    %8 = tpu.iota {dimensions = array<i32: 0>} : vector<16x1xi32>
    %9 = vector.broadcast %7 : i32 to vector<16x1xi32>
    %10 = arith.addi %9, %8 : vector<16x1xi32>
    %c16_i32_4 = arith.constant 16 : i32
    %11 = vector.broadcast %c16_i32_4 : i32 to vector<16x1xi32>
    %12 = arith.cmpi slt, %10, %11 : vector<16x1xi32>
    %c0_i32_5 = arith.constant 0 : i32
    %13 = vector.broadcast %c0_i32_5 : i32 to vector<16x1xi32>
    %14 = arith.cmpi sge, %4, %13 : vector<16x1xi32>
    %15 = arith.andi %12, %14 : vector<16x1xi1>
    %cst = arith.constant dense<0xFF800000> : vector<16xf32>
    %16 = vector.multi_reduction <maximumf>, %3, %cst [1] : vector<16x32xf32> to vector<16xf32>
    %17 = vector.shape_cast %16 : vector<16xf32> to vector<16x1xf32>
    %18 = tpu.iota {dimensions = array<i32: 1>} : vector<16x32xi32>
    %19 = vector.broadcast %4 : vector<16x1xi32> to vector<16x32xi32>
    %20 = arith.cmpi eq, %18, %19 : vector<16x32xi32>
    %cst_6 = arith.constant 0.000000e+00 : f32
    %21 = vector.broadcast %cst_6 : f32 to vector<16x32xf32>
    %22 = arith.select %20, %3, %21 : vector<16x32xi1>, vector<16x32xf32>
    %cst_7 = arith.constant dense<0.000000e+00> : vector<16xf32>
    %23 = vector.multi_reduction <add>, %22, %cst_7 [1] : vector<16x32xf32> to vector<16xf32>
    %24 = vector.shape_cast %23 : vector<16xf32> to vector<16x1xf32>
    %25 = vector.broadcast %17 : vector<16x1xf32> to vector<16x32xf32>
    %26 = arith.subf %3, %25 : vector<16x32xf32>
    %27 = math.exp %26 : vector<16x32xf32>
    %cst_8 = arith.constant dense<0.000000e+00> : vector<16xf32>
    %28 = vector.multi_reduction <add>, %27, %cst_8 [1] : vector<16x32xf32> to vector<16xf32>
    %29 = vector.shape_cast %28 : vector<16xf32> to vector<16x1xf32>
    %30 = math.log %29 : vector<16x1xf32>
    %31 = arith.addf %30, %17 : vector<16x1xf32>
    %32 = arith.subf %31, %24 : vector<16x1xf32>
    %cst_9 = arith.constant 0.000000e+00 : f32
    %33 = vector.broadcast %cst_9 : f32 to vector<16x1xf32>
    %34 = arith.select %15, %32, %33 : vector<16x1xi1>, vector<16x1xf32>
    %c0_10 = arith.constant 0 : index
    %c0_11 = arith.constant 0 : index
    %35 = vector.load %arg6[%c0_10, %c0_11] : memref<16x1xf32, #tpu.memory_space<vmem>>, vector<16x1xf32>
    %36 = arith.addf %35, %34 : vector<16x1xf32>
    %c0_12 = arith.constant 0 : index
    %c0_13 = arith.constant 0 : index
    %37 = vector.load %arg6[%c0_12, %c0_13] : memref<16x1xf32, #tpu.memory_space<vmem>>, vector<16x1xf32>
    tpu.vector_store %arg6[%c0_12, %c0_13], %36 {strides = array<i32>} : memref<16x1xf32, #tpu.memory_space<vmem>>, vector<16x1xf32>,
    %c0_14 = arith.constant 0 : index
    %c0_15 = arith.constant 0 : index
    %38 = vector.load %arg7[%c0_14, %c0_15] : memref<16x1xf32, #tpu.memory_space<vmem>>, vector<16x1xf32>
    %39 = arith.extui %15 : vector<16x1xi1> to vector<16x1xi32>
    %40 = arith.sitofp %39 : vector<16x1xi32> to vector<16x1xf32>
    %41 = arith.addf %38, %40 : vector<16x1xf32>
    %c0_16 = arith.constant 0 : index
    %c0_17 = arith.constant 0 : index
    %42 = vector.load %arg7[%c0_16, %c0_17] : memref<16x1xf32, #tpu.memory_space<vmem>>, vector<16x1xf32>
    tpu.vector_store %arg7[%c0_16, %c0_17], %41 {strides = array<i32>} : memref<16x1xf32, #tpu.memory_space<vmem>>, vector<16x1xf32>,
    %c0_i32_18 = arith.constant 0 : i32
    %43 = arith.cmpi eq, %arg1, %c0_i32_18 : i32
    %44 = arith.extui %43 : i1 to i32
    %c0_i32_19 = arith.constant 0 : i32
    %45 = arith.cmpi ne, %44, %c0_i32_19 : i32
    scf.if %45 {
      %c0_20 = arith.constant 0 : index
      %c0_21 = arith.constant 0 : index
      %46 = vector.load %arg6[%c0_20, %c0_21] : memref<16x1xf32, #tpu.memory_space<vmem>>, vector<16x1xf32>
      %47 = vector.shape_cast %46 : vector<16x1xf32> to vector<1x16x1xf32>
      %cst_22 = arith.constant dense<0.000000e+00> : vector<1xf32>
      %48 = vector.multi_reduction <add>, %47, %cst_22 [1, 2] : vector<1x16x1xf32> to vector<1xf32>
      %49 = vector.shape_cast %48 : vector<1xf32> to vector<1x1x1xf32>
      %50 = vector.extract %49[0, 0, 0] : f32 from vector<1x1x1xf32>
      %51 = vector.broadcast %50 : f32 to vector<1x1x128xf32>
      %c0_23 = arith.constant 0 : index
      %c0_24 = arith.constant 0 : index
      %c0_25 = arith.constant 0 : index
      %52 = vector.load %arg4[%c0_23, %c0_24, %c0_25] : memref<1x1x128xf32, #tpu.memory_space<vmem>>, vector<1x1x128xf32>
      tpu.vector_store %arg4[%c0_23, %c0_24, %c0_25], %51 {strides = array<i32>} : memref<1x1x128xf32, #tpu.memory_space<vmem>>, vector<1x1x128xf32>,
      %c0_26 = arith.constant 0 : index
      %c0_27 = arith.constant 0 : index
      %53 = vector.load %arg7[%c0_26, %c0_27] : memref<16x1xf32, #tpu.memory_space<vmem>>, vector<16x1xf32>
      %54 = vector.shape_cast %53 : vector<16x1xf32> to vector<1x16x1xf32>
      %cst_28 = arith.constant dense<0.000000e+00> : vector<1xf32>
      %55 = vector.multi_reduction <add>, %54, %cst_28 [1, 2] : vector<1x16x1xf32> to vector<1xf32>
      %56 = vector.shape_cast %55 : vector<1xf32> to vector<1x1x1xf32>
      %57 = vector.extract %56[0, 0, 0] : f32 from vector<1x1x1xf32>
      %58 = vector.broadcast %57 : f32 to vector<1x1x128xf32>
      %c0_29 = arith.constant 0 : index
      %c0_30 = arith.constant 0 : index
      %c0_31 = arith.constant 0 : index
      %59 = vector.load %arg5[%c0_29, %c0_30, %c0_31] : memref<1x1x128xf32, #tpu.memory_space<vmem>>, vector<1x1x128xf32>
      tpu.vector_store %arg5[%c0_29, %c0_30, %c0_31], %58 {strides = array<i32>} : memref<1x1x128xf32, #tpu.memory_space<vmem>>, vector<1x1x128xf32>,
    } else {
    }
    return
  }
  func.func @transform_0(%arg0: i32, %arg1: i32) -> (i32, i32) {
    %c1_i32 = arith.constant 1 : i32
    %0 = arith.muli %arg0, %c1_i32 : i32
    %1 = arith.addi %0, %arg1 : i32
    %c0_i32 = arith.constant 0 : i32
    %2 = arith.minsi %1, %c0_i32 : i32
    %c0_i32_0 = arith.constant 0 : i32
    %c0_i32_1 = arith.constant 0 : i32
    return %2, %c0_i32_0 : i32, i32
  }
  func.func @transform_1(%arg0: i32, %arg1: i32) -> (i32, i32) {
    %c1_i32 = arith.constant 1 : i32
    %0 = arith.muli %arg0, %c1_i32 : i32
    %1 = arith.addi %0, %arg1 : i32
    %c0_i32 = arith.constant 0 : i32
    %2 = arith.minsi %1, %c0_i32 : i32
    %c0_i32_0 = arith.constant 0 : i32
    %c0_i32_1 = arith.constant 0 : i32
    return %2, %c0_i32_0 : i32, i32
  }
  func.func @transform_2(%arg0: i32, %arg1: i32) -> (i32, i32, i32) {
    %c0_i32 = arith.constant 0 : i32
    %c0_i32_0 = arith.constant 0 : i32
    %c0_i32_1 = arith.constant 0 : i32
    return %arg0, %c0_i32, %c0_i32_0 : i32, i32, i32
  }
  func.func @transform_3(%arg0: i32, %arg1: i32) -> (i32, i32, i32) {
    %c0_i32 = arith.constant 0 : i32
    %c0_i32_0 = arith.constant 0 : i32
    %c0_i32_1 = arith.constant 0 : i32
    return %arg0, %c0_i32, %c0_i32_0 : i32, i32, i32
  }
}

</mosaic_0001>

<llo_original>
// kernel: caption_cross_entropy_loss.1
$region0: #{caption_cross_entropy_loss.1}
  #allocation0 [shape = 'u32[]', space=smem, size = 0x4, offset = 0x4, fixed_abs, tag = 'smem constant byte address 0x4 - core index']
  #allocation1 [shape = 'u32[144,128]{1,0:T(1,128)}', space=vmem, size = 0x12000, scoped, tag = 'internal scratch']
  #allocation2 [shape = 'f32[16,1]{1,0:T(8,128)}', space=vmem, size = 0x2000, scoped, tag = 'scratch operand']
  #allocation3 [shape = 'f32[16,1]{1,0:T(8,128)}', space=vmem, size = 0x2000, scoped, tag = 'scratch operand']
  %s0 = inlined_call_operand.vmem [shape: f32[16,32], index: 0, kind: input, shape index: {}]
  %s1 = inlined_call_operand.vmem [shape: s32[16,1], index: 1, kind: input, shape index: {}]
  %s2 = inlined_call_operand.vmem [shape: f32[1,1,128], index: 2, kind: output, shape index: {0}]
  %s3 = inlined_call_operand.vmem [shape: f32[1,1,128], index: 3, kind: output, shape index: {1}]
  %4 = xla_tuple %s2, %s3
  %s5 = sld [smem:[#allocation0]]
  $region34: #{caption_cross_entropy_loss.1} parent=0
    _
  %s7 = ssub.s32 1, %s5
  %s8 = scalar_select 0, %s7, %s5
  // Predicated region
  $region2: #{caption_cross_entropy_loss.1} parent=0 // pred_check
    _
  $region3: #{caption_cross_entropy_loss.1} parent=0 // pred_check_branch
    %10 = sbr.rel (0) target = $region5
  $region4: #{caption_cross_entropy_loss.1} parent=0 // pred_region
    %s11 = sadd.s32 0, 0
    %p12 = scmp.lt.s32.totalorder %s11, 0
    %s13 = scalar_select %p12, %s11, 0
    %s14 = smul.u32 2, %s13
    %p15 = scmp.lt.s32.totalorder %s14, 1
    %s16 = scalar_select %p15, %s14, 1
    %s17 = smul.addr %s16, 8
    %s18 = scalar_lea.vmem %s0, %s17
    %s19 = sadd.s32 0, 0
    %p20 = scmp.lt.s32.totalorder %s19, 0
    %s21 = scalar_select %p20, %s19, 0
    %s22 = smul.u32 2, %s21
  $region5: #{caption_cross_entropy_loss.1} parent=0 // pred_fallthru
    _
  // Predicated region
  $region6: #{caption_cross_entropy_loss.1} parent=0 // pred_check
    _
  $region7: #{caption_cross_entropy_loss.1} parent=0 // pred_check_branch
    %24 = sbr.rel (0) target = $region9
  $region8: #{caption_cross_entropy_loss.1} parent=0 // pred_region
    %s25 = sadd.s32 0, 0
    %p26 = scmp.lt.s32.totalorder %s25, 0
    %s27 = scalar_select %p26, %s25, 0
    %s28 = smul.u32 2, %s27
    %p29 = scmp.lt.s32.totalorder %s28, 1
    %s30 = scalar_select %p29, %s28, 1
    %s31 = smul.addr %s30, 8
    %s32 = scalar_lea.vmem %s1, %s31
    %s33 = sadd.s32 0, 0
    %p34 = scmp.lt.s32.totalorder %s33, 0
    %s35 = scalar_select %p34, %s33, 0
    %s36 = smul.u32 2, %s35
  $region9: #{caption_cross_entropy_loss.1} parent=0 // pred_fallthru
    _
  %s37 = sadd.s32 0, 0
  %p38 = scmp.lt.s32.totalorder %s37, 0
  %s39 = scalar_select %p38, %s37, 0
  %s40 = smul.u32 2, %s39
  %p41 = scmp.lt.s32.totalorder %s40, 1
  %s42 = scalar_select %p41, %s40, 1
  %s43 = smul.addr %s42, 8
  %s44 = scalar_lea.vmem %s0, %s43
  %s45 = sadd.s32 0, 0
  %p46 = scmp.lt.s32.totalorder %s45, 0
  %s47 = scalar_select %p46, %s45, 0
  %s48 = smul.u32 2, %s47
  %p49 = scmp.lt.s32.totalorder %s48, 1
  %s50 = scalar_select %p49, %s48, 1
  %s51 = smul.addr %s50, 8
  %s52 = scalar_lea.vmem %s1, %s51
  %s53 = sadd.s32 0, 0
  %p54 = scmp.lt.s32.totalorder %s53, 0
  %s55 = scalar_select %p54, %s53, 0
  %s56 = smul.u32 2, %s55
  %p57 = scmp.lt.s32.totalorder %s56, 1
  %s58 = scalar_select %p57, %s56, 1
  %s59 = smul.addr %s58, 8
  %s60 = scalar_lea.vmem %s0, %s59
  %s61 = sadd.s32 0, 0
  %p62 = scmp.lt.s32.totalorder %s61, 0
  %s63 = scalar_select %p62, %s61, 0
  %s64 = smul.u32 2, %s63
  %s65 = sadd.s32 0, 0
  %p66 = scmp.lt.s32.totalorder %s65, 0
  %s67 = scalar_select %p66, %s65, 0
  %s68 = smul.u32 2, %s67
  %p69 = scmp.lt.s32.totalorder %s68, 1
  %s70 = scalar_select %p69, %s68, 1
  %s71 = smul.addr %s70, 8
  %s72 = scalar_lea.vmem %s1, %s71
  %s73 = sadd.s32 0, 0
  %p74 = scmp.lt.s32.totalorder %s73, 0
  %s75 = scalar_select %p74, %s73, 0
  %s76 = smul.u32 2, %s75
  %p77 = scmp.eq.s32.totalorder 0, 0
  // Predicated region
  $region10: #{caption_cross_entropy_loss.1} parent=0 // pred_check
    %p78 = pneg %p77
  $region11: #{caption_cross_entropy_loss.1} parent=0 // pred_check_branch
    %80 = sbr.rel (%p78) target = $region13
  $region12: #{caption_cross_entropy_loss.1} parent=0 // pred_region
    %vm81 = vcmask 7168
    %82 = vst.msk [vmem:[#allocation2] sm:$0xff] %vm81, 0.0
    %83 = vst.msk [vmem:[#allocation2 + $0x8] sm:$0xff] %vm81, 0.0
    %84 = vst.msk [vmem:[#allocation3] sm:$0xff] %vm81, 0.0
    %85 = vst.msk [vmem:[#allocation3 + $0x8] sm:$0xff] %vm81, 0.0
  $region13: #{caption_cross_entropy_loss.1} parent=0 // pred_fallthru
    _
  %v86 = vld [vmem:[%s60] sm:$0xff]
  %v87 = vld [vmem:[%s60 + $0x8] sm:$0xff]
  %v88 = vld [vmem:[%s72] sm:$0xff]
  %v89 = vld [vmem:[%s72 + $0x8] sm:$0xff]
  %s90 = sadd.s32 0, 0
  %s91 = smul.u32 %s90, 16
  %v92 = vlaneseq
  %v93 = vshrl.u32 %v92, 7
  %v94 = vadd.s32 %v93, 8
  %v95 = vstv %s91
  %v96 = vadd.s32 %v95, %v93
  %v97 = vadd.s32 %v95, %v94
  %vm98 = vcmp.lt.s32.totalorder %v96, 16
  %vm99 = vcmp.lt.s32.totalorder %v97, 16
  %vm100 = vcmp.ge.s32.totalorder %v88, 0
  %vm101 = vcmp.ge.s32.totalorder %v89, 0
  %vm102 = vmand %vm98, %vm100
  %vm103 = vmand %vm99, %vm101
  %vm104 = vcmask 261120
  %v105 = vsel %vm104, %v86, -inf
  %106 = vmax.xlane.f32.xlu0 %v105
  %v107 = vpop.xlane.xlu0 %106
  %v108 = vsel %vm104, %v87, -inf
  %109 = vmax.xlane.f32.xlu0 %v108
  %v110 = vpop.xlane.xlu0 %109
  %v111 = vlaneseq
  %v112 = vand.u32 %v111, 127
  %113 = vset.pattern.permute.xlu0 0
  %114 = vperm.xlu0 %113, %v88
  %v115 = vpop.permute.xlu0 %114
  %116 = vset.pattern.permute.xlu0 0
  %117 = vperm.xlu0 %116, %v89
  %v118 = vpop.permute.xlu0 %117
  %vm119 = vcmp.eq.s32.totalorder %v112, %v115
  %vm120 = vcmp.eq.s32.totalorder %v112, %v118
  %v121 = vsel %vm119, %v86, 0.0
  %v122 = vsel %vm120, %v87, 0.0
  %v123 = vsel %vm104, %v121, 0.0
  %124 = vadd.xlane.f32.xlu0 %v123
  %v125 = vpop.xlane.xlu0 %124
  %v126 = vsel %vm104, %v122, 0.0
  %127 = vadd.xlane.f32.xlu0 %v126
  %v128 = vpop.xlane.xlu0 %127
  %v129 = vsub.f32 %v86, %v107
  %v130 = vsub.f32 %v87, %v110
  %v131 = vmul.f32 %v129, 1.442695
  %v132 = vpow.pop %v131
  %v133 = vmul.f32 %v130, 1.442695
  %v134 = vpow.pop %v133
  %v135 = vsel %vm104, %v132, 0.0
  %136 = vadd.xlane.f32.xlu0 %v135
  %v137 = vpop.xlane.xlu0 %136
  %v138 = vsel %vm104, %v134, 0.0
  %139 = vadd.xlane.f32.xlu0 %v138
  %v140 = vpop.xlane.xlu0 %139
  %v141 = vlog2.pop %v137
  %v142 = vmul.f32 %v141, 0.6931472
  %v143 = vlog2.pop %v140
  %v144 = vmul.f32 %v143, 0.6931472
  %v145 = vadd.f32 %v142, %v107
  %v146 = vadd.f32 %v144, %v110
  %v147 = vsub.f32 %v145, %v125
  %v148 = vsub.f32 %v146, %v128
  %v149 = vsel %vm102, %v147, 0.0
  %v150 = vsel %vm103, %v148, 0.0
  %v151 = vld [vmem:[#allocation2] sm:$0xff]
  %v152 = vld [vmem:[#allocation2 + $0x8] sm:$0xff]
  %v153 = vadd.f32 %v151, %v149
  %v154 = vadd.f32 %v152, %v150
  %vm155 = vcmask 7168
  %156 = vst.msk [vmem:[#allocation2] sm:$0xff] %vm155, %v153
  %157 = vst.msk [vmem:[#allocation2 + $0x8] sm:$0xff] %vm155, %v154
  %v158 = vld [vmem:[#allocation3] sm:$0xff]
  %v159 = vld [vmem:[#allocation3 + $0x8] sm:$0xff]
  %v160 = vsel %vm102, 1, 0
  %v161 = vsel %vm103, 1, 0
  %v162 = vcvt.s32.f32 %v160
  %v163 = vcvt.s32.f32 %v161
  %v164 = vadd.f32 %v158, %v162
  %v165 = vadd.f32 %v159, %v163
  %166 = vst.msk [vmem:[#allocation3] sm:$0xff] %vm155, %v164
  %167 = vst.msk [vmem:[#allocation3 + $0x8] sm:$0xff] %vm155, %v165
  // Predicated region
  $region14: #{caption_cross_entropy_loss.1} parent=0 // pred_check
    %p168 = pneg %p77
  $region15: #{caption_cross_entropy_loss.1} parent=0 // pred_check_branch
    %170 = sbr.rel (%p168) target = $region17
  $region16: #{caption_cross_entropy_loss.1} parent=0 // pred_region
    %v171 = vld [vmem:[#allocation2] sm:$0xff]
    %v172 = vld [vmem:[#allocation2 + $0x8] sm:$0xff]
    %v173 = vsel %vm155, %v171, 0.0
    %v174 = vsel %vm155, %v172, 0.0
    %v175 = vadd.f32 %v173, %v174
    %176 = vadd.xlane.f32.xlu0 %v175
    %v177 = vpop.xlane.xlu0 %176
    %v178 = vrot.slane %v177, 4
    %v179 = vadd.f32 %v177, %v178
    %v180 = vrot.slane %v179, 2
    %v181 = vadd.f32 %v179, %v180
    %v182 = vrot.slane %v181, 1
    %v183 = vadd.f32 %v181, %v182
    %s184 = vtos %v183
    %v185 = vstv %s184
    %186 = vst [vmem:[%s2] sm:$0x1] %v185
    %v187 = vld [vmem:[#allocation3] sm:$0xff]
    %v188 = vld [vmem:[#allocation3 + $0x8] sm:$0xff]
    %v189 = vsel %vm155, %v187, 0.0
    %v190 = vsel %vm155, %v188, 0.0
    %v191 = vadd.f32 %v189, %v190
    %192 = vadd.xlane.f32.xlu0 %v191
    %v193 = vpop.xlane.xlu0 %192
    %v194 = vrot.slane %v193, 4
    %v195 = vadd.f32 %v193, %v194
    %v196 = vrot.slane %v195, 2
    %v197 = vadd.f32 %v195, %v196
    %v198 = vrot.slane %v197, 1
    %v199 = vadd.f32 %v197, %v198
    %s200 = vtos %v199
    %v201 = vstv %s200
    %202 = vst [vmem:[%s3] sm:$0x1] %v201
  $region17: #{caption_cross_entropy_loss.1} parent=0 // pred_fallthru
    _
  // Predicated region
  $region18: #{caption_cross_entropy_loss.1} parent=0 // pred_check
    _
  $region19: #{caption_cross_entropy_loss.1} parent=0 // pred_check_branch
    %204 = sbr.rel (0) target = $region21
  $region20: #{caption_cross_entropy_loss.1} parent=0 // pred_region
    _
  $region21: #{caption_cross_entropy_loss.1} parent=0 // pred_fallthru
    _
  // Predicated region
  $region22: #{caption_cross_entropy_loss.1} parent=0 // pred_check
    _
  $region23: #{caption_cross_entropy_loss.1} parent=0 // pred_check_branch
    %206 = sbr.rel (0) target = $region25
  $region24: #{caption_cross_entropy_loss.1} parent=0 // pred_region
    _
  $region25: #{caption_cross_entropy_loss.1} parent=0 // pred_fallthru
    _
  // Predicated region
  $region26: #{caption_cross_entropy_loss.1} parent=0 // pred_check
    _
  $region27: #{caption_cross_entropy_loss.1} parent=0 // pred_check_branch
    %208 = sbr.rel (0) target = $region29
  $region28: #{caption_cross_entropy_loss.1} parent=0 // pred_region
    _
  $region29: #{caption_cross_entropy_loss.1} parent=0 // pred_fallthru
    _
  // Predicated region
  $region30: #{caption_cross_entropy_loss.1} parent=0 // pred_check
    _
  $region31: #{caption_cross_entropy_loss.1} parent=0 // pred_check_branch
    %210 = sbr.rel (0) target = $region33
  $region32: #{caption_cross_entropy_loss.1} parent=0 // pred_region
    _
  $region33: #{caption_cross_entropy_loss.1} parent=0 // pred_fallthru
    _

</llo_original>
